<compile_context>
chip_gen: v5e
topology: v5e:2x2
jax: 0.10.0
libtpu: 0.0.40
codegen_flags: <defaults>
</compile_context>

<pallas_src>
import functools

import jax
import jax.numpy as jnp
from jax import lax
from jax.experimental import pallas as pl
from jax.experimental.pallas import tpu as pltpu

_PAD_L = 8   # sublane-aligned scratch column where the un-padded activation starts


def _inverted_residual_kernel(*refs, H, W, Ho, Wo, stride, hidden, cin, cout,
                              use_res, has_expand, exp_chunks, row_chunks):
    """One batch element per grid step. Fuses expand -> depthwise -> project (+residual).
       BN scales are pre-folded into the weights; only bias adds + PReLU remain here."""
    if has_expand:
        (x_ref, w1_ref, b1_ref, p1_ref,
         wdw_ref, b2_ref, p2_ref,
         w3_ref, b3_ref,
         o_ref, pad_ref) = refs
    else:
        (x_ref,
         wdw_ref, b2_ref, p2_ref,
         w3_ref, b3_ref,
         o_ref, pad_ref) = refs
        w1_ref = b1_ref = p1_ref = None

    base = _PAD_L - 1                       # scratch column holding conv-padding column 0
    wbuf = pad_ref.shape[1]

    x = x_ref[0].astype(jnp.float32)        # (H, W, cin)

    # --- re-zero only the 1-pixel border the depthwise taps read; the interior is fully
    #     overwritten below, so no state is carried across grid steps ------------------
    pad_ref[0:1, :, :] = jnp.zeros((1, wbuf, hidden), jnp.float32)
    pad_ref[H + 1:H + 2, :, :] = jnp.zeros((1, wbuf, hidden), jnp.float32)
    pad_ref[1:H + 1, base:base + 1, :] = jnp.zeros((H, 1, hidden), jnp.float32)
    pad_ref[1:H + 1, base + W + 1:base + W + 2, :] = jnp.zeros((H, 1, hidden), jnp.float32)

    # --- 1x1 expand conv (BN scale folded into w1) + bias + PReLU, written straight into
    #     the padded scratch in row chunks; interior store is sublane-aligned -----------
    if has_expand:
        b1 = b1_ref[...]
        p1 = p1_ref[...]
        for h0, hh in exp_chunks:
            xc = x[h0:h0 + hh].reshape(hh * W, cin).astype(w1_ref.dtype)
            xe = jnp.dot(xc, w1_ref[...], preferred_element_type=jnp.float32)
            xe = xe + b1
            xe = jnp.where(xe > 0, xe, p1 * xe)
            pad_ref[1 + h0:1 + h0 + hh, _PAD_L:_PAD_L + W, :] = xe.reshape(hh, W, hidden)
    else:
        # expand_ratio == 1: the PyTorch module has no expand stage (hidden == cin)
        pad_ref[1:H + 1, _PAD_L:_PAD_L + W, :] = x

    b2 = b2_ref[...]
    p2 = p2_ref[...]
    b3 = b3_ref[...]
    taps = [wdw_ref[t:t + 1, :] for t in range(9)]   # (1, hidden) each, BN scale folded

    # --- 3x3 depthwise + BN bias + PReLU, then 1x1 projection + BN bias (+ residual),
    #     tiled over output-row chunks so accumulators stay small and projection/store
    #     are fused per chunk ------------------------------------------------------------
    for r0, rows in row_chunks:
        acc = jnp.zeros((rows, Wo, hidden), jnp.float32)
        for dh in range(3):
            for dw in range(3):
                if stride == 1:
                    patch = pad_ref[r0 + dh:r0 + dh + rows,
                                    base + dw:base + dw + Wo, :]
                else:   # stride == 2: strided reads, no reshape/select decimation
                    patch = pad_ref[pl.ds(2 * r0 + dh, rows, stride=2),
                                    pl.ds(base + dw, Wo, stride=2), :]
                acc = acc + patch * taps[dh * 3 + dw]
        acc = acc + b2
        acc = jnp.where(acc > 0, acc, p2 * acc)

        y = jnp.dot(acc.reshape(rows * Wo, hidden).astype(w3_ref.dtype), w3_ref[...],
                    preferred_element_type=jnp.float32)          # (rows*Wo, cout)
        y = y + b3
        if use_res:                                              # stride == 1 and cin == cout
            y = y + x[r0:r0 + rows].reshape(rows * Wo, cout)
        o_ref[0, r0 * Wo:(r0 + rows) * Wo, :] = y


def _chunks(total, target):
    target = ((max(8, target) + 7) // 8) * 8
    chunk = min(total, target)
    return tuple((r0, min(chunk, total - r0)) for r0 in range(0, total, chunk))


def inverted_residual(x_nchw, params, stride, *, compute_dtype=jnp.float32):
    """InvertedResidual forward. NCHW in / NCHW out (PyTorch layout); internally NHWC.

    `compute_dtype=jnp.bfloat16` halves MXU time / weight bytes on v6e/v7x; the
    depthwise + elementwise path stays f32 (v5e has no bf16 VPU path)."""
    assert stride in (1, 2)
    x = jnp.transpose(x_nchw, (0, 2, 3, 1)).astype(jnp.float32)          # NHWC
    N, H, W, cin = x.shape
    hidden = params["wdw"].shape[-1]
    cout = params["w3"].shape[1]
    Ho = (H - 1) // stride + 1
    Wo = (W - 1) // stride + 1
    has_expand = "w1" in params
    if not has_expand:
        assert hidden == cin, "expand_ratio == 1 requires hidden == inp"
    use_res = (stride == 1) and (cin == cout)

    # ---- fold (inference-mode) BatchNorm scales into the conv weights ----
    vec = lambda v: v.reshape(1, -1).astype(jnp.float32)
    wdwf = (params["wdw"] * params["s2"][None, None, :]).reshape(9, hidden).astype(jnp.float32)
    w3f = (params["w3"] * params["s3"][None, :]).astype(compute_dtype)

    args = [x]
    if has_expand:
        w1f = (params["w1"] * params["s1"][None, :]).astype(compute_dtype)
        args += [w1f, vec(params["b1"]), vec(params["p1"])]
    args += [wdwf, vec(params["b2"]), vec(params["p2"]), w3f, vec(params["b3"])]

    exp_chunks = _chunks(H, -(-256 // W))        # expand-matmul row chunks
    row_chunks = _chunks(Ho, -(-128 // Wo))      # depthwise + projection row chunks

    kernel = functools.partial(
        _inverted_residual_kernel,
        H=H, W=W, Ho=Ho, Wo=Wo, stride=stride, hidden=hidden, cin=cin, cout=cout,
        use_res=use_res, has_expand=has_expand,
        exp_chunks=exp_chunks, row_chunks=row_chunks)

    def full_spec(a):
        nd = a.ndim
        return pl.BlockSpec(a.shape, lambda n, _nd=nd: (0,) * _nd)

    in_specs = [pl.BlockSpec((1, H, W, cin), lambda n: (n, 0, 0, 0))]
    in_specs += [full_spec(a) for a in args[1:]]

    wbuf = _PAD_L + W + 1
    # Rough per-step VMEM footprint (scratch + double-buffered blocks + weights); raise the
    # scoped-VMEM limit only for production-sized shapes.
    # TODO(synk): on v7x (64 MiB physical VMEM) very large H*W*hidden should switch to
    #             spatial row tiling with a 1-row halo instead of whole-image scratch.
    est = 4 * ((H + 2) * wbuf * hidden + 2 * H * W * cin + 2 * Ho * Wo * cout
               + 2 * H * W * hidden + cin * hidden + hidden * cout + 16 * hidden)
    vmem_limit = int(min(2 * est, 64 << 20)) if est > (12 << 20) else None

    out = pl.pallas_call(
        kernel,
        out_shape=jax.ShapeDtypeStruct((N, Ho * Wo, cout), jnp.float32),
        grid=(N,),
        in_specs=in_specs,
        out_specs=pl.BlockSpec((1, Ho * Wo, cout), lambda n: (n, 0, 0)),
        scratch_shapes=[pltpu.VMEM((H + 2, wbuf, hidden), jnp.float32)],
        compiler_params=pltpu.CompilerParams(
            dimension_semantics=("parallel",),
            vmem_limit_bytes=vmem_limit),
    )(*args)

    out = out.reshape(N, Ho, Wo, cout)
    return jnp.transpose(out, (0, 3, 1, 2))                              # back to NCHW


def init_params(key, inp, oup, expand_ratio, eps=1e-5):
    """Deterministic synthetic parameters mirroring the PyTorch module in eval mode.
       BatchNorm is represented by per-channel (scale, bias); activation is per-channel PReLU."""
    hidden = int(round(inp * expand_ratio))
    ks = jax.random.split(key, 8)

    def bn(k, c):
        kg, kb, km, kv = jax.random.split(k, 4)
        gamma = 0.5 + jax.random.uniform(kg, (c,), jnp.float32)
        beta = 0.1 * jax.random.normal(kb, (c,), jnp.float32)
        mean = 0.1 * jax.random.normal(km, (c,), jnp.float32)
        var = 0.5 + jax.random.uniform(kv, (c,), jnp.float32)
        scale = gamma / jnp.sqrt(var + eps)
        bias = beta - mean * scale
        return scale, bias

    params = {}
    if expand_ratio != 1:
        params["w1"] = 0.1 * jax.random.normal(ks[0], (inp, hidden), jnp.float32)
        params["s1"], params["b1"] = bn(ks[1], hidden)
        params["p1"] = 0.1 + 0.4 * jax.random.uniform(ks[2], (hidden,), jnp.float32)
    params["wdw"] = 0.1 * jax.random.normal(ks[3], (3, 3, hidden), jnp.float32)
    params["s2"], params["b2"] = bn(ks[4], hidden)
    params["p2"] = 0.1 + 0.4 * jax.random.uniform(ks[5], (hidden,), jnp.float32)
    params["w3"] = 0.1 * jax.random.normal(ks[6], (hidden, oup), jnp.float32)
    params["s3"], params["b3"] = bn(ks[7], oup)
    return params


def reference(x_nchw, params, stride):
    """Pure-JAX reference mirroring the PyTorch forward (eval-mode BN, per-channel PReLU)."""
    x = jnp.transpose(x_nchw, (0, 2, 3, 1)).astype(jnp.float32)
    hidden = params["wdw"].shape[-1]
    hp = lax.Precision.HIGHEST

    y = x
    if "w1" in params:
        y = jnp.einsum("nhwc,cd->nhwd", y, params["w1"], precision=hp)
        y = y * params["s1"] + params["b1"]
        y = jnp.where(y > 0, y, params["p1"] * y)

    dw = params["wdw"].reshape(3, 3, 1, hidden)
    y = lax.conv_general_dilated(y, dw, (stride, stride), ((1, 1), (1, 1)),
                                 dimension_numbers=("NHWC", "HWIO", "NHWC"),
                                 feature_group_count=hidden, precision=hp)
    y = y * params["s2"] + params["b2"]
    y = jnp.where(y > 0, y, params["p2"] * y)

    y = jnp.einsum("nhwc,cd->nhwd", y, params["w3"], precision=hp)
    y = y * params["s3"] + params["b3"]

    if stride == 1 and x.shape[-1] == y.shape[-1]:
        y = x + y
    return jnp.transpose(y, (0, 3, 1, 2))


if __name__ == "__main__":
    key = jax.random.PRNGKey(0)

    configs = [
        # (inp, oup, expand_ratio, stride, N, H, W)
        (32, 32, 4, 1, 2, 8, 8),     # expand + residual
        (32, 24, 4, 2, 2, 16, 16),   # expand + stride-2 (strided-tap path), no residual
        (32, 32, 1, 1, 2, 8, 8),     # expand_ratio == 1 (expand stage skipped) + residual
    ]

    for i, (inp, oup, er, stride, N, H, W) in enumerate(configs):
        pkey, xkey = jax.random.split(jax.random.fold_in(key, i))
        params = init_params(pkey, inp, oup, er)
        x = jax.random.normal(xkey, (N, inp, H, W), jnp.float32)

        out = jax.block_until_ready(inverted_residual(x, params, stride))
        ref = reference(x, params, stride)

        Ho = (H - 1) // stride + 1
        Wo = (W - 1) // stride + 1
        assert out.shape == (N, oup, Ho, Wo), (i, out.shape)
        max_err = float(jnp.max(jnp.abs(out - ref)))
        assert jnp.allclose(out, ref, rtol=2e-3, atol=2e-3), \
            f"config {i}: max abs err {max_err}"

    print("KERNEL_OK")
</pallas_src>

<mosaic_0001>
module attributes {stable_mosaic.version = 11 : i64} {
  func.func @_inverted_residual_kernel(%arg0: i32, %arg1: memref<1x8x8x32xf32, #tpu.memory_space<vmem>>, %arg2: memref<32x128xf32, #tpu.memory_space<vmem>>, %arg3: memref<1x128xf32, #tpu.memory_space<vmem>>, %arg4: memref<1x128xf32, #tpu.memory_space<vmem>>, %arg5: memref<9x128xf32, #tpu.memory_space<vmem>>, %arg6: memref<1x128xf32, #tpu.memory_space<vmem>>, %arg7: memref<1x128xf32, #tpu.memory_space<vmem>>, %arg8: memref<128x32xf32, #tpu.memory_space<vmem>>, %arg9: memref<1x32xf32, #tpu.memory_space<vmem>>, %arg10: memref<1x64x32xf32, #tpu.memory_space<vmem>>, %arg11: memref<10x17x128xf32, #tpu.memory_space<vmem>>) attributes {dimension_semantics = [#tpu.dimension_semantics<parallel>], iteration_bounds = array<i64: 2>, scalar_prefetch = 0 : i64, scratch_operands = 1 : i64, tpu.core_type = #tpu.core_type<tc>, window_params = [{transform_indices = @transform_0, window_bounds = array<i64: 1, 8, 8, 32>}, {pipeline_mode = #tpu.pipeline_mode<synchronous>, transform_indices = @transform_1, window_bounds = array<i64: 32, 128>}, {pipeline_mode = #tpu.pipeline_mode<synchronous>, transform_indices = @transform_2, window_bounds = array<i64: 1, 128>}, {pipeline_mode = #tpu.pipeline_mode<synchronous>, transform_indices = @transform_3, window_bounds = array<i64: 1, 128>}, {pipeline_mode = #tpu.pipeline_mode<synchronous>, transform_indices = @transform_4, window_bounds = array<i64: 9, 128>}, {pipeline_mode = #tpu.pipeline_mode<synchronous>, transform_indices = @transform_5, window_bounds = array<i64: 1, 128>}, {pipeline_mode = #tpu.pipeline_mode<synchronous>, transform_indices = @transform_6, window_bounds = array<i64: 1, 128>}, {pipeline_mode = #tpu.pipeline_mode<synchronous>, transform_indices = @transform_7, window_bounds = array<i64: 128, 32>}, {pipeline_mode = #tpu.pipeline_mode<synchronous>, transform_indices = @transform_8, window_bounds = array<i64: 1, 32>}, {transform_indices = @transform_9, window_bounds = array<i64: 1, 64, 32>}]} {
    %c0 = arith.constant 0 : index
    %c0_0 = arith.constant 0 : index
    %c0_1 = arith.constant 0 : index
    %c0_2 = arith.constant 0 : index
    %0 = vector.load %arg1[%c0, %c0_0, %c0_1, %c0_2] : memref<1x8x8x32xf32, #tpu.memory_space<vmem>>, vector<1x8x8x32xf32>
    %1 = vector.shape_cast %0 : vector<1x8x8x32xf32> to vector<8x8x32xf32>
    %cst = arith.constant 0.000000e+00 : f32
    %2 = vector.broadcast %cst : f32 to vector<1x17x128xf32>
    %c0_3 = arith.constant 0 : index
    %c0_4 = arith.constant 0 : index
    %c0_5 = arith.constant 0 : index
    %3 = vector.load %arg11[%c0_3, %c0_4, %c0_5] : memref<10x17x128xf32, #tpu.memory_space<vmem>>, vector<1x17x128xf32>
    tpu.vector_store %arg11[%c0_3, %c0_4, %c0_5], %2 {strides = array<i32>} : memref<10x17x128xf32, #tpu.memory_space<vmem>>, vector<1x17x128xf32>,
    %cst_6 = arith.constant 0.000000e+00 : f32
    %4 = vector.broadcast %cst_6 : f32 to vector<1x17x128xf32>
    %c9 = arith.constant 9 : index
    %c0_7 = arith.constant 0 : index
    %c0_8 = arith.constant 0 : index
    %5 = vector.load %arg11[%c9, %c0_7, %c0_8] : memref<10x17x128xf32, #tpu.memory_space<vmem>>, vector<1x17x128xf32>
    tpu.vector_store %arg11[%c9, %c0_7, %c0_8], %4 {strides = array<i32>} : memref<10x17x128xf32, #tpu.memory_space<vmem>>, vector<1x17x128xf32>,
    %cst_9 = arith.constant 0.000000e+00 : f32
    %6 = vector.broadcast %cst_9 : f32 to vector<8x1x128xf32>
    %c1 = arith.constant 1 : index
    %c7 = arith.constant 7 : index
    %c0_10 = arith.constant 0 : index
    %7 = vector.load %arg11[%c1, %c7, %c0_10] : memref<10x17x128xf32, #tpu.memory_space<vmem>>, vector<8x1x128xf32>
    tpu.vector_store %arg11[%c1, %c7, %c0_10], %6 {strides = array<i32>} : memref<10x17x128xf32, #tpu.memory_space<vmem>>, vector<8x1x128xf32>,
    %cst_11 = arith.constant 0.000000e+00 : f32
    %8 = vector.broadcast %cst_11 : f32 to vector<8x1x128xf32>
    %c1_12 = arith.constant 1 : index
    %c16 = arith.constant 16 : index
    %c0_13 = arith.constant 0 : index
    %9 = vector.load %arg11[%c1_12, %c16, %c0_13] : memref<10x17x128xf32, #tpu.memory_space<vmem>>, vector<8x1x128xf32>
    tpu.vector_store %arg11[%c1_12, %c16, %c0_13], %8 {strides = array<i32>} : memref<10x17x128xf32, #tpu.memory_space<vmem>>, vector<8x1x128xf32>,
    %c0_14 = arith.constant 0 : index
    %c0_15 = arith.constant 0 : index
    %10 = vector.load %arg3[%c0_14, %c0_15] : memref<1x128xf32, #tpu.memory_space<vmem>>, vector<1x128xf32>
    %c0_16 = arith.constant 0 : index
    %c0_17 = arith.constant 0 : index
    %11 = vector.load %arg4[%c0_16, %c0_17] : memref<1x128xf32, #tpu.memory_space<vmem>>, vector<1x128xf32>
    %12 = vector.shape_cast %1 : vector<8x8x32xf32> to vector<64x32xf32>
    %c0_18 = arith.constant 0 : index
    %c0_19 = arith.constant 0 : index
    %13 = vector.load %arg2[%c0_18, %c0_19] : memref<32x128xf32, #tpu.memory_space<vmem>>, vector<32x128xf32>
    %cst_20 = arith.constant dense<0.000000e+00> : vector<64x128xf32>
    %14 = tpu.matmul %12, %13, %cst_20 {dimension_numbers = #tpu.dot_dimension_numbers<[1], [0], [0], [1], [0, 0, 1, 1], [], []>} : vector<64x32xf32>, vector<32x128xf32>, vector<64x128xf32> -> vector<64x128xf32>
    %15 = vector.broadcast %10 : vector<1x128xf32> to vector<64x128xf32>
    %16 = arith.addf %14, %15 : vector<64x128xf32>
    %cst_21 = arith.constant 0.000000e+00 : f32
    %17 = vector.broadcast %cst_21 : f32 to vector<64x128xf32>
    %18 = arith.cmpf ogt, %16, %17 : vector<64x128xf32>
    %19 = vector.broadcast %11 : vector<1x128xf32> to vector<64x128xf32>
    %20 = arith.mulf %19, %16 : vector<64x128xf32>
    %21 = arith.select %18, %16, %20 : vector<64x128xi1>, vector<64x128xf32>
    %22 = vector.shape_cast %21 : vector<64x128xf32> to vector<8x8x128xf32>
    %c1_22 = arith.constant 1 : index
    %c8 = arith.constant 8 : index
    %c0_23 = arith.constant 0 : index
    %23 = vector.load %arg11[%c1_22, %c8, %c0_23] : memref<10x17x128xf32, #tpu.memory_space<vmem>>, vector<8x8x128xf32>
    tpu.vector_store %arg11[%c1_22, %c8, %c0_23], %22 {strides = array<i32>} : memref<10x17x128xf32, #tpu.memory_space<vmem>>, vector<8x8x128xf32>,
    %c0_24 = arith.constant 0 : index
    %c0_25 = arith.constant 0 : index
    %24 = vector.load %arg6[%c0_24, %c0_25] : memref<1x128xf32, #tpu.memory_space<vmem>>, vector<1x128xf32>
    %c0_26 = arith.constant 0 : index
    %c0_27 = arith.constant 0 : index
    %25 = vector.load %arg7[%c0_26, %c0_27] : memref<1x128xf32, #tpu.memory_space<vmem>>, vector<1x128xf32>
    %c0_28 = arith.constant 0 : index
    %c0_29 = arith.constant 0 : index
    %26 = vector.load %arg9[%c0_28, %c0_29] : memref<1x32xf32, #tpu.memory_space<vmem>>, vector<1x32xf32>
    %c0_30 = arith.constant 0 : index
    %c0_31 = arith.constant 0 : index
    %27 = vector.load %arg5[%c0_30, %c0_31] : memref<9x128xf32, #tpu.memory_space<vmem>>, vector<1x128xf32>
    %c1_32 = arith.constant 1 : index
    %c0_33 = arith.constant 0 : index
    %28 = vector.load %arg5[%c1_32, %c0_33] : memref<9x128xf32, #tpu.memory_space<vmem>>, vector<1x128xf32>
    %c2 = arith.constant 2 : index
    %c0_34 = arith.constant 0 : index
    %29 = vector.load %arg5[%c2, %c0_34] : memref<9x128xf32, #tpu.memory_space<vmem>>, vector<1x128xf32>
    %c3 = arith.constant 3 : index
    %c0_35 = arith.constant 0 : index
    %30 = vector.load %arg5[%c3, %c0_35] : memref<9x128xf32, #tpu.memory_space<vmem>>, vector<1x128xf32>
    %c4 = arith.constant 4 : index
    %c0_36 = arith.constant 0 : index
    %31 = vector.load %arg5[%c4, %c0_36] : memref<9x128xf32, #tpu.memory_space<vmem>>, vector<1x128xf32>
    %c5 = arith.constant 5 : index
    %c0_37 = arith.constant 0 : index
    %32 = vector.load %arg5[%c5, %c0_37] : memref<9x128xf32, #tpu.memory_space<vmem>>, vector<1x128xf32>
    %c6 = arith.constant 6 : index
    %c0_38 = arith.constant 0 : index
    %33 = vector.load %arg5[%c6, %c0_38] : memref<9x128xf32, #tpu.memory_space<vmem>>, vector<1x128xf32>
    %c7_39 = arith.constant 7 : index
    %c0_40 = arith.constant 0 : index
    %34 = vector.load %arg5[%c7_39, %c0_40] : memref<9x128xf32, #tpu.memory_space<vmem>>, vector<1x128xf32>
    %c8_41 = arith.constant 8 : index
    %c0_42 = arith.constant 0 : index
    %35 = vector.load %arg5[%c8_41, %c0_42] : memref<9x128xf32, #tpu.memory_space<vmem>>, vector<1x128xf32>
    %cst_43 = arith.constant 0.000000e+00 : f32
    %36 = vector.broadcast %cst_43 : f32 to vector<8x8x128xf32>
    %c0_44 = arith.constant 0 : index
    %c7_45 = arith.constant 7 : index
    %c0_46 = arith.constant 0 : index
    %37 = vector.load %arg11[%c0_44, %c7_45, %c0_46] : memref<10x17x128xf32, #tpu.memory_space<vmem>>, vector<8x8x128xf32>
    %38 = vector.shape_cast %27 : vector<1x128xf32> to vector<1x1x128xf32>
    %39 = vector.broadcast %38 : vector<1x1x128xf32> to vector<8x8x128xf32>
    %40 = arith.mulf %37, %39 : vector<8x8x128xf32>
    %41 = arith.addf %36, %40 : vector<8x8x128xf32>
    %c0_47 = arith.constant 0 : index
    %c8_48 = arith.constant 8 : index
    %c0_49 = arith.constant 0 : index
    %42 = vector.load %arg11[%c0_47, %c8_48, %c0_49] : memref<10x17x128xf32, #tpu.memory_space<vmem>>, vector<8x8x128xf32>
    %43 = vector.shape_cast %28 : vector<1x128xf32> to vector<1x1x128xf32>
    %44 = vector.broadcast %43 : vector<1x1x128xf32> to vector<8x8x128xf32>
    %45 = arith.mulf %42, %44 : vector<8x8x128xf32>
    %46 = arith.addf %41, %45 : vector<8x8x128xf32>
    %c0_50 = arith.constant 0 : index
    %c9_51 = arith.constant 9 : index
    %c0_52 = arith.constant 0 : index
    %47 = vector.load %arg11[%c0_50, %c9_51, %c0_52] : memref<10x17x128xf32, #tpu.memory_space<vmem>>, vector<8x8x128xf32>
    %48 = vector.shape_cast %29 : vector<1x128xf32> to vector<1x1x128xf32>
    %49 = vector.broadcast %48 : vector<1x1x128xf32> to vector<8x8x128xf32>
    %50 = arith.mulf %47, %49 : vector<8x8x128xf32>
    %51 = arith.addf %46, %50 : vector<8x8x128xf32>
    %c1_53 = arith.constant 1 : index
    %c7_54 = arith.constant 7 : index
    %c0_55 = arith.constant 0 : index
    %52 = vector.load %arg11[%c1_53, %c7_54, %c0_55] : memref<10x17x128xf32, #tpu.memory_space<vmem>>, vector<8x8x128xf32>
    %53 = vector.shape_cast %30 : vector<1x128xf32> to vector<1x1x128xf32>
    %54 = vector.broadcast %53 : vector<1x1x128xf32> to vector<8x8x128xf32>
    %55 = arith.mulf %52, %54 : vector<8x8x128xf32>
    %56 = arith.addf %51, %55 : vector<8x8x128xf32>
    %c1_56 = arith.constant 1 : index
    %c8_57 = arith.constant 8 : index
    %c0_58 = arith.constant 0 : index
    %57 = vector.load %arg11[%c1_56, %c8_57, %c0_58] : memref<10x17x128xf32, #tpu.memory_space<vmem>>, vector<8x8x128xf32>
    %58 = vector.shape_cast %31 : vector<1x128xf32> to vector<1x1x128xf32>
    %59 = vector.broadcast %58 : vector<1x1x128xf32> to vector<8x8x128xf32>
    %60 = arith.mulf %57, %59 : vector<8x8x128xf32>
    %61 = arith.addf %56, %60 : vector<8x8x128xf32>
    %c1_59 = arith.constant 1 : index
    %c9_60 = arith.constant 9 : index
    %c0_61 = arith.constant 0 : index
    %62 = vector.load %arg11[%c1_59, %c9_60, %c0_61] : memref<10x17x128xf32, #tpu.memory_space<vmem>>, vector<8x8x128xf32>
    %63 = vector.shape_cast %32 : vector<1x128xf32> to vector<1x1x128xf32>
    %64 = vector.broadcast %63 : vector<1x1x128xf32> to vector<8x8x128xf32>
    %65 = arith.mulf %62, %64 : vector<8x8x128xf32>
    %66 = arith.addf %61, %65 : vector<8x8x128xf32>
    %c2_62 = arith.constant 2 : index
    %c7_63 = arith.constant 7 : index
    %c0_64 = arith.constant 0 : index
    %67 = vector.load %arg11[%c2_62, %c7_63, %c0_64] : memref<10x17x128xf32, #tpu.memory_space<vmem>>, vector<8x8x128xf32>
    %68 = vector.shape_cast %33 : vector<1x128xf32> to vector<1x1x128xf32>
    %69 = vector.broadcast %68 : vector<1x1x128xf32> to vector<8x8x128xf32>
    %70 = arith.mulf %67, %69 : vector<8x8x128xf32>
    %71 = arith.addf %66, %70 : vector<8x8x128xf32>
    %c2_65 = arith.constant 2 : index
    %c8_66 = arith.constant 8 : index
    %c0_67 = arith.constant 0 : index
    %72 = vector.load %arg11[%c2_65, %c8_66, %c0_67] : memref<10x17x128xf32, #tpu.memory_space<vmem>>, vector<8x8x128xf32>
    %73 = vector.shape_cast %34 : vector<1x128xf32> to vector<1x1x128xf32>
    %74 = vector.broadcast %73 : vector<1x1x128xf32> to vector<8x8x128xf32>
    %75 = arith.mulf %72, %74 : vector<8x8x128xf32>
    %76 = arith.addf %71, %75 : vector<8x8x128xf32>
    %c2_68 = arith.constant 2 : index
    %c9_69 = arith.constant 9 : index
    %c0_70 = arith.constant 0 : index
    %77 = vector.load %arg11[%c2_68, %c9_69, %c0_70] : memref<10x17x128xf32, #tpu.memory_space<vmem>>, vector<8x8x128xf32>
    %78 = vector.shape_cast %35 : vector<1x128xf32> to vector<1x1x128xf32>
    %79 = vector.broadcast %78 : vector<1x1x128xf32> to vector<8x8x128xf32>
    %80 = arith.mulf %77, %79 : vector<8x8x128xf32>
    %81 = arith.addf %76, %80 : vector<8x8x128xf32>
    %82 = vector.shape_cast %24 : vector<1x128xf32> to vector<1x1x128xf32>
    %83 = vector.broadcast %82 : vector<1x1x128xf32> to vector<8x8x128xf32>
    %84 = arith.addf %81, %83 : vector<8x8x128xf32>
    %cst_71 = arith.constant 0.000000e+00 : f32
    %85 = vector.broadcast %cst_71 : f32 to vector<8x8x128xf32>
    %86 = arith.cmpf ogt, %84, %85 : vector<8x8x128xf32>
    %87 = vector.shape_cast %25 : vector<1x128xf32> to vector<1x1x128xf32>
    %88 = vector.broadcast %87 : vector<1x1x128xf32> to vector<8x8x128xf32>
    %89 = arith.mulf %88, %84 : vector<8x8x128xf32>
    %90 = arith.select %86, %84, %89 : vector<8x8x128xi1>, vector<8x8x128xf32>
    %91 = vector.shape_cast %90 : vector<8x8x128xf32> to vector<64x128xf32>
    %c0_72 = arith.constant 0 : index
    %c0_73 = arith.constant 0 : index
    %92 = vector.load %arg8[%c0_72, %c0_73] : memref<128x32xf32, #tpu.memory_space<vmem>>, vector<128x32xf32>
    %cst_74 = arith.constant dense<0.000000e+00> : vector<64x32xf32>
    %93 = tpu.matmul %91, %92, %cst_74 {dimension_numbers = #tpu.dot_dimension_numbers<[1], [0], [0], [1], [0, 0, 1, 1], [], []>} : vector<64x128xf32>, vector<128x32xf32>, vector<64x32xf32> -> vector<64x32xf32>
    %94 = vector.broadcast %26 : vector<1x32xf32> to vector<64x32xf32>
    %95 = arith.addf %93, %94 : vector<64x32xf32>
    %96 = vector.shape_cast %1 : vector<8x8x32xf32> to vector<64x32xf32>
    %97 = arith.addf %95, %96 : vector<64x32xf32>
    %c0_75 = arith.constant 0 : index
    %c0_76 = arith.constant 0 : index
    %c0_77 = arith.constant 0 : index
    %98 = vector.load %arg10[%c0_75, %c0_76, %c0_77] : memref<1x64x32xf32, #tpu.memory_space<vmem>>, vector<1x64x32xf32>
    %99 = vector.shape_cast %98 : vector<1x64x32xf32> to vector<64x32xf32>
    %100 = vector.shape_cast %97 : vector<64x32xf32> to vector<1x64x32xf32>
    tpu.vector_store %arg10[%c0_75, %c0_76, %c0_77], %100 {strides = array<i32>} : memref<1x64x32xf32, #tpu.memory_space<vmem>>, vector<1x64x32xf32>,
    return
  }
  func.func @transform_0(%arg0: i32) -> (i32, i32, i32, i32) {
    %c0_i32 = arith.constant 0 : i32
    %c0_i32_0 = arith.constant 0 : i32
    %c0_i32_1 = arith.constant 0 : i32
    %c0_i32_2 = arith.constant 0 : i32
    return %arg0, %c0_i32, %c0_i32_0, %c0_i32_1 : i32, i32, i32, i32
  }
  func.func @transform_1(%arg0: i32) -> (i32, i32) {
    %c0_i32 = arith.constant 0 : i32
    %c0_i32_0 = arith.constant 0 : i32
    %c0_i32_1 = arith.constant 0 : i32
    return %c0_i32, %c0_i32_0 : i32, i32
  }
  func.func @transform_2(%arg0: i32) -> (i32, i32) {
    %c0_i32 = arith.constant 0 : i32
    %c0_i32_0 = arith.constant 0 : i32
    %c0_i32_1 = arith.constant 0 : i32
    return %c0_i32, %c0_i32_0 : i32, i32
  }
  func.func @transform_3(%arg0: i32) -> (i32, i32) {
    %c0_i32 = arith.constant 0 : i32
    %c0_i32_0 = arith.constant 0 : i32
    %c0_i32_1 = arith.constant 0 : i32
    return %c0_i32, %c0_i32_0 : i32, i32
  }
  func.func @transform_4(%arg0: i32) -> (i32, i32) {
    %c0_i32 = arith.constant 0 : i32
    %c0_i32_0 = arith.constant 0 : i32
    %c0_i32_1 = arith.constant 0 : i32
    return %c0_i32, %c0_i32_0 : i32, i32
  }
  func.func @transform_5(%arg0: i32) -> (i32, i32) {
    %c0_i32 = arith.constant 0 : i32
    %c0_i32_0 = arith.constant 0 : i32
    %c0_i32_1 = arith.constant 0 : i32
    return %c0_i32, %c0_i32_0 : i32, i32
  }
  func.func @transform_6(%arg0: i32) -> (i32, i32) {
    %c0_i32 = arith.constant 0 : i32
    %c0_i32_0 = arith.constant 0 : i32
    %c0_i32_1 = arith.constant 0 : i32
    return %c0_i32, %c0_i32_0 : i32, i32
  }
  func.func @transform_7(%arg0: i32) -> (i32, i32) {
    %c0_i32 = arith.constant 0 : i32
    %c0_i32_0 = arith.constant 0 : i32
    %c0_i32_1 = arith.constant 0 : i32
    return %c0_i32, %c0_i32_0 : i32, i32
  }
  func.func @transform_8(%arg0: i32) -> (i32, i32) {
    %c0_i32 = arith.constant 0 : i32
    %c0_i32_0 = arith.constant 0 : i32
    %c0_i32_1 = arith.constant 0 : i32
    return %c0_i32, %c0_i32_0 : i32, i32
  }
  func.func @transform_9(%arg0: i32) -> (i32, i32, i32) {
    %c0_i32 = arith.constant 0 : i32
    %c0_i32_0 = arith.constant 0 : i32
    %c0_i32_1 = arith.constant 0 : i32
    return %arg0, %c0_i32, %c0_i32_0 : i32, i32, i32
  }
}

</mosaic_0001>

<llo_original>
// kernel: tpu_custom_call.1
$region0: #{tpu_custom_call.1}
  #allocation0 [shape = 'u32[]', space=smem, size = 0x4, offset = 0x4, fixed_abs, tag = 'smem constant byte address 0x4 - core index']
  #allocation1 [shape = 'u32[72,128]{1,0:T(1,128)}', space=vmem, size = 0x9000, scoped, tag = 'internal scratch']
  #allocation2 [shape = 'f32[10,17,128]{2,1,0:T(8,128)}', space=vmem, size = 0x1e000, scoped, tag = 'scratch operand']
  %s0 = inlined_call_operand.vmem [shape: f32[2,8,8,32], index: 0, kind: input, shape index: {}]
  %s1 = inlined_call_operand.vmem [shape: f32[32,128], index: 1, kind: input, shape index: {}]
  %s2 = inlined_call_operand.vmem [shape: f32[1,128], index: 2, kind: input, shape index: {}]
  %s3 = inlined_call_operand.hbm [shape: f32[1,128], index: 3, kind: input, shape index: {}]
  %s4 = inlined_call_operand.hbm [shape: f32[9,128], index: 4, kind: input, shape index: {}]
  %s5 = inlined_call_operand.vmem [shape: f32[1,128], index: 5, kind: input, shape index: {}]
  %s6 = inlined_call_operand.vmem [shape: f32[1,128], index: 6, kind: input, shape index: {}]
  %s7 = inlined_call_operand.vmem [shape: f32[128,32], index: 7, kind: input, shape index: {}]
  %s8 = inlined_call_operand.vmem [shape: f32[1,32], index: 8, kind: input, shape index: {}]
  %s9 = inlined_call_operand.vmem [shape: f32[2,64,32], index: 9, kind: output, shape index: {}]
  %s10 = sld [smem:[#allocation0]]
  $region77: #{tpu_custom_call.1} parent=0
    _
  %s12 = ssub.s32 1, %s10
  %s13 = scalar_select 0, %s12, %s10
  $region1: #{tpu_custom_call.1} parent=0
    #allocation3 [shape = 'u8[512]{0}', space=vmem, size = 0x400, scoped, tag = 'input window, operand 3, single buffered']
    #allocation4 [shape = 's32[2]{0}', space=sflag, size = 0x8, scoped, tag = 'scoped memory for tpu_custom_call.1']
    #allocation5 [shape = 'u8[8192]{0}', space=vmem, size = 0x2000, scoped, tag = 'input window, operand 4, single buffered']
    #allocation6 [shape = 's32[1]{0}', space=sflag, size = 0x4, scoped, tag = 'scoped memory for tpu_custom_call.1']
    %14 = vsyncpa [#allocation4], 0
    %15 = vsyncpa [#allocation6], 0
    loop: start=0, step=1, limit=4
    $region2: #{tpu_custom_call.1} parent=1 // loop_pre_header
      _
    $region3: #{tpu_custom_call.1} parent=1 // loop_header
      %s17 = sphi 0, %s21
      %p18 = scmp.ge.s32.totalorder %s17, 4
      %s27 = sphi 0, %s29
      %s30 = sphi 0, %s27
      %s31 = sphi 0, %s30
      %s47 = sphi 0, %s31
      %s51 = sphi 0, %s51
      %s53 = sphi 0, %s51
      %s54 = sphi 0, %s53
      %s68 = sphi 0, %s54
      %s72 = sphi 0, %s72
      %s74 = sphi 0, %s72
      %s75 = sphi 0, %s74
      %s89 = sphi 0, %s75
      %s93 = sphi 0, %s93
      %s95 = sphi 0, %s93
      %s96 = sphi 0, %s95
      %s110 = sphi 0, %s96
      %s114 = sphi 0, %s114
      %s116 = sphi 0, %s114
      %s117 = sphi 0, %s116
      %s131 = sphi 0, %s117
      %s135 = sphi 0, %s135
      %s137 = sphi 0, %s135
      %s138 = sphi 0, %s137
      %s152 = sphi 0, %s138
      %s156 = sphi 0, %s156
      %s158 = sphi 0, %s156
      %s159 = sphi 0, %s158
      %s173 = sphi 0, %s159
      %s177 = sphi 0, %s177
      %s179 = sphi 0, %s177
      %s180 = sphi 0, %s179
      %s194 = sphi 0, %s180
      %s198 = sphi 0, %s198
      %s200 = sphi 0, %s198
      %s201 = sphi 0, %s200
      %s215 = sphi 0, %s201
      %s221 = sphi 0, %s223
      %s224 = sphi 0, %s221
      %s225 = sphi 0, %s224
      %s241 = sphi 0, %s225
    $region4: #{tpu_custom_call.1} parent=1 // loop_header_branch
      %20 = sbr.rel (%p18) target = $region8
    $region5: #{tpu_custom_call.1} parent=1 // loop_body
      %s22 = ssub.s32 %s17, 1
      %s23 = ssub.s32 %s17, 2
      %s24 = sadd.s32 %s17, 1
      %s25 = ssub.s32 %s17, %s24
      %p26 = scmp.eq.s32.totalorder %s25, 0
      %s28 = sadd.s32 %s27, 1
      %s29 = scalar_select %p26, %s27, %s28
      %p32 = pneg %p26
      %p33 = scmp.eq.s32.totalorder %s17, 1
      %p34 = por %p32, %p33
      %p35 = scmp.ne.s32.totalorder %s27, %s30
      %p36 = scmp.eq.s32.totalorder %s17, 0
      %p37 = por %p35, %p36
      %p38 = scmp.ne.s32.totalorder %s27, %s30
      %p39 = scmp.eq.s32.totalorder %s22, 1
      %p40 = por %p38, %p39
      %p41 = scmp.ne.s32.totalorder %s30, %s31
      %p42 = scmp.eq.s32.totalorder %s22, 0
      %p43 = por %p41, %p42
      %p44 = scmp.ne.s32.totalorder %s30, %s31
      %p45 = scmp.eq.s32.totalorder %s23, 1
      %p46 = por %p44, %p45
      %p48 = scmp.ne.s32.totalorder %s31, %s47
      %p49 = scmp.eq.s32.totalorder %s23, 0
      %p50 = por %p48, %p49
      %s52 = sadd.s32 %s51, 1
      %p55 = scmp.eq.s32.totalorder %s17, 1
      %p56 = scmp.ne.s32.totalorder %s51, %s53
      %p57 = scmp.eq.s32.totalorder %s17, 0
      %p58 = por %p56, %p57
      %p59 = scmp.ne.s32.totalorder %s51, %s53
      %p60 = scmp.eq.s32.totalorder %s22, 1
      %p61 = por %p59, %p60
      %p62 = scmp.ne.s32.totalorder %s53, %s54
      %p63 = scmp.eq.s32.totalorder %s22, 0
      %p64 = por %p62, %p63
      %p65 = scmp.ne.s32.totalorder %s53, %s54
      %p66 = scmp.eq.s32.totalorder %s23, 1
      %p67 = por %p65, %p66
      %p69 = scmp.ne.s32.totalorder %s54, %s68
      %p70 = scmp.eq.s32.totalorder %s23, 0
      %p71 = por %p69, %p70
      %s73 = sadd.s32 %s72, 1
      %p76 = scmp.eq.s32.totalorder %s17, 1
      %p77 = scmp.ne.s32.totalorder %s72, %s74
      %p78 = scmp.eq.s32.totalorder %s17, 0
      %p79 = por %p77, %p78
      %p80 = scmp.ne.s32.totalorder %s72, %s74
      %p81 = scmp.eq.s32.totalorder %s22, 1
      %p82 = por %p80, %p81
      %p83 = scmp.ne.s32.totalorder %s74, %s75
      %p84 = scmp.eq.s32.totalorder %s22, 0
      %p85 = por %p83, %p84
      %p86 = scmp.ne.s32.totalorder %s74, %s75
      %p87 = scmp.eq.s32.totalorder %s23, 1
      %p88 = por %p86, %p87
      %p90 = scmp.ne.s32.totalorder %s75, %s89
      %p91 = scmp.eq.s32.totalorder %s23, 0
      %p92 = por %p90, %p91
      %s94 = sadd.s32 %s93, 1
      %p97 = scmp.eq.s32.totalorder %s17, 1
      %p98 = scmp.ne.s32.totalorder %s93, %s95
      %p99 = scmp.eq.s32.totalorder %s17, 0
      %p100 = por %p98, %p99
      %p101 = scmp.ne.s32.totalorder %s93, %s95
      %p102 = scmp.eq.s32.totalorder %s22, 1
      %p103 = por %p101, %p102
      %p104 = scmp.ne.s32.totalorder %s95, %s96
      %p105 = scmp.eq.s32.totalorder %s22, 0
      %p106 = por %p104, %p105
      %p107 = scmp.ne.s32.totalorder %s95, %s96
      %p108 = scmp.eq.s32.totalorder %s23, 1
      %p109 = por %p107, %p108
      %p111 = scmp.ne.s32.totalorder %s96, %s110
      %p112 = scmp.eq.s32.totalorder %s23, 0
      %p113 = por %p111, %p112
      %s115 = sadd.s32 %s114, 1
      %p118 = scmp.eq.s32.totalorder %s17, 1
      %p119 = scmp.ne.s32.totalorder %s114, %s116
      %p120 = scmp.eq.s32.totalorder %s17, 0
      %p121 = por %p119, %p120
      %p122 = scmp.ne.s32.totalorder %s114, %s116
      %p123 = scmp.eq.s32.totalorder %s22, 1
      %p124 = por %p122, %p123
      %p125 = scmp.ne.s32.totalorder %s116, %s117
      %p126 = scmp.eq.s32.totalorder %s22, 0
      %p127 = por %p125, %p126
      %p128 = scmp.ne.s32.totalorder %s116, %s117
      %p129 = scmp.eq.s32.totalorder %s23, 1
      %p130 = por %p128, %p129
      %p132 = scmp.ne.s32.totalorder %s117, %s131
      %p133 = scmp.eq.s32.totalorder %s23, 0
      %p134 = por %p132, %p133
      %s136 = sadd.s32 %s135, 1
      %p139 = scmp.eq.s32.totalorder %s17, 1
      %p140 = scmp.ne.s32.totalorder %s135, %s137
      %p141 = scmp.eq.s32.totalorder %s17, 0
      %p142 = por %p140, %p141
      %p143 = scmp.ne.s32.totalorder %s135, %s137
      %p144 = scmp.eq.s32.totalorder %s22, 1
      %p145 = por %p143, %p144
      %p146 = scmp.ne.s32.totalorder %s137, %s138
      %p147 = scmp.eq.s32.totalorder %s22, 0
      %p148 = por %p146, %p147
      %p149 = scmp.ne.s32.totalorder %s137, %s138
      %p150 = scmp.eq.s32.totalorder %s23, 1
      %p151 = por %p149, %p150
      %p153 = scmp.ne.s32.totalorder %s138, %s152
      %p154 = scmp.eq.s32.totalorder %s23, 0
      %p155 = por %p153, %p154
      %s157 = sadd.s32 %s156, 1
      %p160 = scmp.eq.s32.totalorder %s17, 1
      %p161 = scmp.ne.s32.totalorder %s156, %s158
      %p162 = scmp.eq.s32.totalorder %s17, 0
      %p163 = por %p161, %p162
      %p164 = scmp.ne.s32.totalorder %s156, %s158
      %p165 = scmp.eq.s32.totalorder %s22, 1
      %p166 = por %p164, %p165
      %p167 = scmp.ne.s32.totalorder %s158, %s159
      %p168 = scmp.eq.s32.totalorder %s22, 0
      %p169 = por %p167, %p168
      %p170 = scmp.ne.s32.totalorder %s158, %s159
      %p171 = scmp.eq.s32.totalorder %s23, 1
      %p172 = por %p170, %p171
      %p174 = scmp.ne.s32.totalorder %s159, %s173
      %p175 = scmp.eq.s32.totalorder %s23, 0
      %p176 = por %p174, %p175
      %s178 = sadd.s32 %s177, 1
      %p181 = scmp.eq.s32.totalorder %s17, 1
      %p182 = scmp.ne.s32.totalorder %s177, %s179
      %p183 = scmp.eq.s32.totalorder %s17, 0
      %p184 = por %p182, %p183
      %p185 = scmp.ne.s32.totalorder %s177, %s179
      %p186 = scmp.eq.s32.totalorder %s22, 1
      %p187 = por %p185, %p186
      %p188 = scmp.ne.s32.totalorder %s179, %s180
      %p189 = scmp.eq.s32.totalorder %s22, 0
      %p190 = por %p188, %p189
      %p191 = scmp.ne.s32.totalorder %s179, %s180
      %p192 = scmp.eq.s32.totalorder %s23, 1
      %p193 = por %p191, %p192
      %p195 = scmp.ne.s32.totalorder %s180, %s194
      %p196 = scmp.eq.s32.totalorder %s23, 0
      %p197 = por %p195, %p196
      %s199 = sadd.s32 %s198, 1
      %p202 = scmp.eq.s32.totalorder %s17, 1
      %p203 = scmp.ne.s32.totalorder %s198, %s200
      %p204 = scmp.eq.s32.totalorder %s17, 0
      %p205 = por %p203, %p204
      %p206 = scmp.ne.s32.totalorder %s198, %s200
      %p207 = scmp.eq.s32.totalorder %s22, 1
      %p208 = por %p206, %p207
      %p209 = scmp.ne.s32.totalorder %s200, %s201
      %p210 = scmp.eq.s32.totalorder %s22, 0
      %p211 = por %p209, %p210
      %p212 = scmp.ne.s32.totalorder %s200, %s201
      %p213 = scmp.eq.s32.totalorder %s23, 1
      %p214 = por %p212, %p213
      %p216 = scmp.ne.s32.totalorder %s201, %s215
      %p217 = scmp.eq.s32.totalorder %s23, 0
      %p218 = por %p216, %p217
      %s219 = ssub.s32 %s17, %s24
      %p220 = scmp.eq.s32.totalorder %s219, 0
      %s222 = sadd.s32 %s221, 1
      %s223 = scalar_select %p220, %s221, %s222
      %p226 = pneg %p220
      %p227 = scmp.eq.s32.totalorder %s17, 1
      %p228 = por %p226, %p227
      %p229 = scmp.ne.s32.totalorder %s221, %s224
      %p230 = scmp.eq.s32.totalorder %s17, 0
      %p231 = por %p229, %p230
      %p232 = scmp.ne.s32.totalorder %s221, %s224
      %p233 = scmp.eq.s32.totalorder %s22, 1
      %p234 = por %p232, %p233
      %p235 = scmp.ne.s32.totalorder %s224, %s225
      %p236 = scmp.eq.s32.totalorder %s22, 0
      %p237 = por %p235, %p236
      %p238 = scmp.ne.s32.totalorder %s224, %s225
      %p239 = scmp.eq.s32.totalorder %s23, 1
      %p240 = por %p238, %p239
      %p242 = scmp.ne.s32.totalorder %s225, %s241
      %p243 = scmp.eq.s32.totalorder %s23, 0
      %p244 = por %p242, %p243
      %p245 = scmp.le.s32.totalorder 1, %s17
      %p246 = scmp.lt.s32.totalorder %s17, 3
      %p247 = pnand %p245, %p246
      %p248 = pneg %p247
      // Predicated region
      $region9: #{tpu_custom_call.1} parent=5 // pred_check
        _
      $region10: #{tpu_custom_call.1} parent=5 // pred_check_branch
        %250 = sbr.rel (%p247) target = $region12
      $region11: #{tpu_custom_call.1} parent=5 // pred_region
        %s251 = ssub.s32 %s17, 1
        // Predicated region
        $region13: #{tpu_custom_call.1} parent=11 // pred_check
          %p252 = pneg %p64
        $region14: #{tpu_custom_call.1} parent=11 // pred_check_branch
          %254 = sbr.rel (%p252) target = $region16
        $region15: #{tpu_custom_call.1} parent=11 // pred_region
          _
        $region16: #{tpu_custom_call.1} parent=11 // pred_fallthru
          _
        // Predicated region
        $region17: #{tpu_custom_call.1} parent=11 // pred_check
          %p255 = pneg %p85
        $region18: #{tpu_custom_call.1} parent=11 // pred_check_branch
          %257 = sbr.rel (%p255) target = $region20
        $region19: #{tpu_custom_call.1} parent=11 // pred_region
          _
        $region20: #{tpu_custom_call.1} parent=11 // pred_fallthru
          _
        // Predicated region
        $region21: #{tpu_custom_call.1} parent=11 // pred_check
          %p258 = pneg %p106
        $region22: #{tpu_custom_call.1} parent=11 // pred_check_branch
          %260 = sbr.rel (%p258) target = $region24
        $region23: #{tpu_custom_call.1} parent=11 // pred_region
          %262 = vsyncadd [#allocation4], 0
          %s264 = sshll.u32 %s3, 4
          %s265 = int_to_ptr.hbm [resolvable:$true] %s264
          %s266 = sshll.u32 [#allocation3], 4
          %s267 = int_to_ptr.vmem [resolvable:$true] %s266
          %269 = dma.hbm_to_vmem [thread:$0]  %s265, 16, %s267, [#allocation4]
        $region24: #{tpu_custom_call.1} parent=11 // pred_fallthru
          _
        // Predicated region
        $region25: #{tpu_custom_call.1} parent=11 // pred_check
          %p270 = pneg %p127
        $region26: #{tpu_custom_call.1} parent=11 // pred_check_branch
          %272 = sbr.rel (%p270) target = $region28
        $region27: #{tpu_custom_call.1} parent=11 // pred_region
          %274 = vsyncadd [#allocation6], 0
          %s275 = sshll.u32 %s4, 4
          %s276 = int_to_ptr.hbm [resolvable:$true] %s275
          %s277 = sshll.u32 [#allocation5], 4
          %s278 = int_to_ptr.vmem [resolvable:$true] %s277
          %283 = dma.hbm_to_vmem [thread:$0]  %s276, 256, %s278, [#allocation6], 128, 128, 8
        $region28: #{tpu_custom_call.1} parent=11 // pred_fallthru
          _
        // Predicated region
        $region29: #{tpu_custom_call.1} parent=11 // pred_check
          %p284 = pneg %p148
        $region30: #{tpu_custom_call.1} parent=11 // pred_check_branch
          %286 = sbr.rel (%p284) target = $region32
        $region31: #{tpu_custom_call.1} parent=11 // pred_region
          _
        $region32: #{tpu_custom_call.1} parent=11 // pred_fallthru
          _
        // Predicated region
        $region33: #{tpu_custom_call.1} parent=11 // pred_check
          %p287 = pneg %p169
        $region34: #{tpu_custom_call.1} parent=11 // pred_check_branch
          %289 = sbr.rel (%p287) target = $region36
        $region35: #{tpu_custom_call.1} parent=11 // pred_region
          _
        $region36: #{tpu_custom_call.1} parent=11 // pred_fallthru
          _
        // Predicated region
        $region37: #{tpu_custom_call.1} parent=11 // pred_check
          %p290 = pneg %p190
        $region38: #{tpu_custom_call.1} parent=11 // pred_check_branch
          %292 = sbr.rel (%p290) target = $region40
        $region39: #{tpu_custom_call.1} parent=11 // pred_region
          _
        $region40: #{tpu_custom_call.1} parent=11 // pred_fallthru
          _
        // Predicated region
        $region41: #{tpu_custom_call.1} parent=11 // pred_check
          %p293 = pneg %p211
        $region42: #{tpu_custom_call.1} parent=11 // pred_check_branch
          %295 = sbr.rel (%p293) target = $region44
        $region43: #{tpu_custom_call.1} parent=11 // pred_region
          _
        $region44: #{tpu_custom_call.1} parent=11 // pred_fallthru
          _
      $region12: #{tpu_custom_call.1} parent=5 // pred_fallthru
        _
      %p296 = scmp.lt.s32.totalorder %s17, 2
      // Predicated region
      $region45: #{tpu_custom_call.1} parent=5 // pred_check
        %p297 = pneg %p296
      $region46: #{tpu_custom_call.1} parent=5 // pred_check_branch
        %299 = sbr.rel (%p297) target = $region48
      $region47: #{tpu_custom_call.1} parent=5 // pred_region
        // Predicated region
        $region49: #{tpu_custom_call.1} parent=47 // pred_check
          %p300 = pneg %p37
        $region50: #{tpu_custom_call.1} parent=47 // pred_check_branch
          %302 = sbr.rel (%p300) target = $region52
        $region51: #{tpu_custom_call.1} parent=47 // pred_region
          %p303 = scmp.lt.s32.totalorder %s17, 1
          %s304 = scalar_select %p303, %s17, 1
          %s305 = smul.addr %s304, 8
          %s306 = smul.addr %s305, 8
          %s307 = scalar_lea.vmem %s0, %s306
        $region52: #{tpu_custom_call.1} parent=47 // pred_fallthru
          _
      $region48: #{tpu_custom_call.1} parent=5 // pred_fallthru
        _
      %p308 = scmp.le.s32.totalorder 1, %s17
      %p309 = scmp.lt.s32.totalorder %s17, 3
      %p310 = pnand %p308, %p309
      %p311 = pneg %p310
      // Predicated region
      $region53: #{tpu_custom_call.1} parent=5 // pred_check
        _
      $region54: #{tpu_custom_call.1} parent=5 // pred_check_branch
        %313 = sbr.rel (%p310) target = $region56
      $region55: #{tpu_custom_call.1} parent=5 // pred_region
        %s314 = ssub.s32 %s17, 1
        // Predicated region
        $region57: #{tpu_custom_call.1} parent=55 // pred_check
          %p315 = pneg %p106
        $region58: #{tpu_custom_call.1} parent=55 // pred_check_branch
          %317 = sbr.rel (%p315) target = $region60
        $region59: #{tpu_custom_call.1} parent=55 // pred_region
          %319 = dma.done [#allocation4], 16
        $region60: #{tpu_custom_call.1} parent=55 // pred_fallthru
          _
        // Predicated region
        $region61: #{tpu_custom_call.1} parent=55 // pred_check
          %p320 = pneg %p127
        $region62: #{tpu_custom_call.1} parent=55 // pred_check_branch
          %322 = sbr.rel (%p320) target = $region64
        $region63: #{tpu_custom_call.1} parent=55 // pred_region
          %324 = dma.done [#allocation6], 256
        $region64: #{tpu_custom_call.1} parent=55 // pred_fallthru
          _
        %p325 = scmp.lt.s32.totalorder %s22, 1
        %s326 = scalar_select %p325, %s22, 1
        %s327 = smul.addr %s326, 8
        %s328 = smul.addr %s327, 8
        %s329 = scalar_lea.vmem %s0, %s328
        %p330 = pneg %p43
        %p331 = pneg %p40
        %p332 = pneg %p64
        %p333 = pneg %p61
        %p334 = pneg %p85
        %p335 = pneg %p82
        %p336 = pneg %p106
        %p337 = pneg %p103
        %p338 = pneg %p127
        %p339 = pneg %p124
        %p340 = pneg %p148
        %p341 = pneg %p145
        %p342 = pneg %p169
        %p343 = pneg %p166
        %p344 = pneg %p190
        %p345 = pneg %p187
        %p346 = pneg %p211
        %p347 = pneg %p208
        %p348 = pneg %p237
        %p349 = pneg %p234
        %p350 = scmp.lt.s32.totalorder %s22, 1
        %s351 = scalar_select %p350, %s22, 1
        %s352 = smul.addr %s351, 8
        %s353 = smul.addr %s352, 8
        %s354 = scalar_lea.vmem %s9, %s353
        %p355 = scmp.lt.s32.totalorder %s22, 1
        %s356 = scalar_select %p355, %s22, 1
        %s357 = smul.addr %s356, 8
        %s358 = smul.addr %s357, 8
        %s359 = scalar_lea.vmem %s0, %s358
        %p360 = scmp.lt.s32.totalorder %s22, 1
        %s361 = scalar_select %p360, %s22, 1
        %s362 = smul.addr %s361, 8
        %s363 = smul.addr %s362, 8
        %s364 = scalar_lea.vmem %s9, %s363
        %v365 = vld [vmem:[%s359] sm:$0xff]
        %v366 = vld [vmem:[%s359 + $0x8] sm:$0xff]
        %v367 = vld [vmem:[%s359 + $0x10] sm:$0xff]
        %v368 = vld [vmem:[%s359 + $0x18] sm:$0xff]
        %v369 = vld [vmem:[%s359 + $0x20] sm:$0xff]
        %v370 = vld [vmem:[%s359 + $0x28] sm:$0xff]
        %v371 = vld [vmem:[%s359 + $0x30] sm:$0xff]
        %v372 = vld [vmem:[%s359 + $0x38] sm:$0xff]
        %373 = vst [vmem:[#allocation2] sm:$0xff] 0.0
        %374 = vst [vmem:[#allocation2 + $0x8] sm:$0xff] 0.0
        %375 = vst [vmem:[#allocation2 + $0x10] sm:$0x1] 0.0
        %s376 = scalar_lea.vmem [#allocation2], 216
        %377 = vst [vmem:[%s376] sm:$0xff] 0.0
        %378 = vst [vmem:[%s376 + $0x8] sm:$0xff] 0.0
        %379 = vst [vmem:[%s376 + $0x10] sm:$0x1] 0.0
        %s380 = scalar_lea.vmem [#allocation2], 24
        %381 = vst [vmem:[%s380 + $0x7] sm:$0x1] 0.0
        %382 = vst [vmem:[%s380 + $0x1f] sm:$0x1] 0.0
        %383 = vst [vmem:[%s380 + $0x37] sm:$0x1] 0.0
        %384 = vst [vmem:[%s380 + $0x4f] sm:$0x1] 0.0
        %385 = vst [vmem:[%s380 + $0x67] sm:$0x1] 0.0
        %386 = vst [vmem:[%s380 + $0x7f] sm:$0x1] 0.0
        %387 = vst [vmem:[%s380 + $0x97] sm:$0x1] 0.0
        %388 = vst [vmem:[%s380 + $0xaf] sm:$0x1] 0.0
        %389 = vst [vmem:[%s380 + $0x10] sm:$0x1] 0.0
        %390 = vst [vmem:[%s380 + $0x28] sm:$0x1] 0.0
        %391 = vst [vmem:[%s380 + $0x40] sm:$0x1] 0.0
        %392 = vst [vmem:[%s380 + $0x58] sm:$0x1] 0.0
        %393 = vst [vmem:[%s380 + $0x70] sm:$0x1] 0.0
        %394 = vst [vmem:[%s380 + $0x88] sm:$0x1] 0.0
        %395 = vst [vmem:[%s380 + $0xa0] sm:$0x1] 0.0
        %396 = vst [vmem:[%s380 + $0xb8] sm:$0x1] 0.0
        %v397 = vld [vmem:[%s2] sm:$0x1]
        %v398 = vld [vmem:[#allocation3] sm:$0x1]
        %v399 = vld [vmem:[%s1] sm:$0xff]
        %v400 = vld [vmem:[%s1 + $0x8] sm:$0xff]
        %v401 = vld [vmem:[%s1 + $0x10] sm:$0xff]
        %v402 = vld [vmem:[%s1 + $0x18] sm:$0xff]
        %v404 = vperm.slane %v397, 0
        %vm406 = vcmask 261120
        %v408 = vsel %vm406, %v365, 0
        %v411 = vsel %vm406, %v366, 0
        %v414 = vsel %vm406, %v367, 0
        %v417 = vsel %vm406, %v368, 0
        %v420 = vsel %vm406, %v369, 0
        %v423 = vsel %vm406, %v370, 0
        %v426 = vsel %vm406, %v371, 0
        %v429 = vsel %vm406, %v372, 0
        %431 = vmatpush.msra.mxu0 0.0
        %432 = vmatpush.msra.mxu0 0.0
        %433 = vmatpush.msra.mxu0 0.0
        %434 = vmatpush.msra.mxu0 0.0
        %435 = vmatpush.msra.mxu0 0.0
        %436 = vmatpush.msra.mxu0 0.0
        %437 = vmatpush.msra.mxu0 0.0
        %438 = vmatpush.msra.mxu0 0.0
        %439 = vmatpush.msra.mxu0 0.0
        %440 = vmatpush.msra.mxu0 0.0
        %441 = vmatpush.msra.mxu0 0.0
        %442 = vmatpush.msra.mxu0 0.0
        %443 = vmatpush.msra.mxu0 %v402
        %444 = vmatpush.msra.mxu0 %v401
        %445 = vmatpush.msra.mxu0 %v400
        %446 = vmatpush.msra.mxu0 %v399
        %447 = vmatmul.f32.gmra.mxu0 %v408
        %v448 = vpop.f32.mrf.mxu0
        %v449 = vadd.f32 %v404, %v448
        %450 = vmatmul.f32.gmra.mxu0 %v411
        %v451 = vpop.f32.mrf.mxu0
        %v452 = vadd.f32 %v404, %v451
        %453 = vmatmul.f32.gmra.mxu0 %v414
        %v454 = vpop.f32.mrf.mxu0
        %v455 = vadd.f32 %v404, %v454
        %456 = vmatmul.f32.gmra.mxu0 %v417
        %v457 = vpop.f32.mrf.mxu0
        %v458 = vadd.f32 %v404, %v457
        %459 = vmatmul.f32.gmra.mxu0 %v420
        %v460 = vpop.f32.mrf.mxu0
        %v461 = vadd.f32 %v404, %v460
        %462 = vmatmul.f32.gmra.mxu0 %v423
        %v463 = vpop.f32.mrf.mxu0
        %v464 = vadd.f32 %v404, %v463
        %465 = vmatmul.f32.gmra.mxu0 %v426
        %v466 = vpop.f32.mrf.mxu0
        %v467 = vadd.f32 %v404, %v466
        %468 = vmatmul.f32.gmra.mxu0 %v429
        %v469 = vpop.f32.mrf.mxu0
        %v470 = vadd.f32 %v404, %v469
        %471 = vdwg.mxu0
        %vm472 = vcmp.gt.f32.partialorder %v449, 0.0
        %vm473 = vcmp.gt.f32.partialorder %v452, 0.0
        %vm474 = vcmp.gt.f32.partialorder %v455, 0.0
        %vm475 = vcmp.gt.f32.partialorder %v458, 0.0
        %vm476 = vcmp.gt.f32.partialorder %v461, 0.0
        %vm477 = vcmp.gt.f32.partialorder %v464, 0.0
        %vm478 = vcmp.gt.f32.partialorder %v467, 0.0
        %vm479 = vcmp.gt.f32.partialorder %v470, 0.0
        %v481 = vperm.slane %v398, 0
        %v483 = vmul.f32 %v481, %v449
        %v484 = vmul.f32 %v481, %v452
        %v485 = vmul.f32 %v481, %v455
        %v486 = vmul.f32 %v481, %v458
        %v487 = vmul.f32 %v481, %v461
        %v488 = vmul.f32 %v481, %v464
        %v489 = vmul.f32 %v481, %v467
        %v490 = vmul.f32 %v481, %v470
        %v491 = vsel %vm472, %v449, %v483
        %v492 = vsel %vm473, %v452, %v484
        %v493 = vsel %vm474, %v455, %v485
        %v494 = vsel %vm475, %v458, %v486
        %v495 = vsel %vm476, %v461, %v487
        %v496 = vsel %vm477, %v464, %v488
        %v497 = vsel %vm478, %v467, %v489
        %v498 = vsel %vm479, %v470, %v490
        %499 = vst [vmem:[%s380 + $0x8] sm:$0xff] %v491
        %500 = vst [vmem:[%s380 + $0x20] sm:$0xff] %v492
        %501 = vst [vmem:[%s380 + $0x38] sm:$0xff] %v493
        %502 = vst [vmem:[%s380 + $0x50] sm:$0xff] %v494
        %503 = vst [vmem:[%s380 + $0x68] sm:$0xff] %v495
        %504 = vst [vmem:[%s380 + $0x80] sm:$0xff] %v496
        %505 = vst [vmem:[%s380 + $0x98] sm:$0xff] %v497
        %506 = vst [vmem:[%s380 + $0xb0] sm:$0xff] %v498
        %v507 = vld [vmem:[%s5] sm:$0x1]
        %v508 = vld [vmem:[%s6] sm:$0x1]
        %v509 = vld [vmem:[%s8] sm:$0x1]
        %v510 = vld [vmem:[#allocation5] sm:$0x1]
        %v511 = vld [vmem:[#allocation5 + $0x1] sm:$0x1]
        %v512 = vld [vmem:[#allocation5 + $0x2] sm:$0x1]
        %v513 = vld [vmem:[#allocation5 + $0x3] sm:$0x1]
        %v514 = vld [vmem:[#allocation5 + $0x4] sm:$0x1]
        %v515 = vld [vmem:[#allocation5 + $0x5] sm:$0x1]
        %v516 = vld [vmem:[#allocation5 + $0x6] sm:$0x1]
        %v517 = vld [vmem:[#allocation5 + $0x7] sm:$0x1]
        %v518 = vld [vmem:[#allocation5 + $0x8] sm:$0x1]
        %v519 = vld [vmem:[#allocation2 + $0x7] sm:$0xff]
        %v520 = vld [vmem:[#allocation2 + $0x1f] sm:$0xff]
        %v521 = vld [vmem:[#allocation2 + $0x37] sm:$0xff]
        %v522 = vld [vmem:[#allocation2 + $0x4f] sm:$0xff]
        %v523 = vld [vmem:[#allocation2 + $0x67] sm:$0xff]
        %v524 = vld [vmem:[#allocation2 + $0x7f] sm:$0xff]
        %v525 = vld [vmem:[#allocation2 + $0x97] sm:$0xff]
        %v526 = vld [vmem:[#allocation2 + $0xaf] sm:$0xff]
        %v527 = vperm.slane %v510, 0
        %v528 = vmul.f32 %v519, %v527
        %v529 = vmul.f32 %v520, %v527
        %v530 = vmul.f32 %v521, %v527
        %v531 = vmul.f32 %v522, %v527
        %v532 = vmul.f32 %v523, %v527
        %v533 = vmul.f32 %v524, %v527
        %v534 = vmul.f32 %v525, %v527
        %v535 = vmul.f32 %v526, %v527
        %v536 = vadd.f32 %v528, 0.0
        %v537 = vadd.f32 %v529, 0.0
        %v538 = vadd.f32 %v530, 0.0
        %v539 = vadd.f32 %v531, 0.0
        %v540 = vadd.f32 %v532, 0.0
        %v541 = vadd.f32 %v533, 0.0
        %v542 = vadd.f32 %v534, 0.0
        %v543 = vadd.f32 %v535, 0.0
        %v544 = vld [vmem:[#allocation2 + $0x8] sm:$0xff]
        %v545 = vld [vmem:[#allocation2 + $0x20] sm:$0xff]
        %v546 = vld [vmem:[#allocation2 + $0x38] sm:$0xff]
        %v547 = vld [vmem:[#allocation2 + $0x50] sm:$0xff]
        %v548 = vld [vmem:[#allocation2 + $0x68] sm:$0xff]
        %v549 = vld [vmem:[#allocation2 + $0x80] sm:$0xff]
        %v550 = vld [vmem:[#allocation2 + $0x98] sm:$0xff]
        %v551 = vld [vmem:[#allocation2 + $0xb0] sm:$0xff]
        %v552 = vperm.slane %v511, 0
        %v553 = vmul.f32 %v544, %v552
        %v554 = vmul.f32 %v545, %v552
        %v555 = vmul.f32 %v546, %v552
        %v556 = vmul.f32 %v547, %v552
        %v557 = vmul.f32 %v548, %v552
        %v558 = vmul.f32 %v549, %v552
        %v559 = vmul.f32 %v550, %v552
        %v560 = vmul.f32 %v551, %v552
        %v561 = vadd.f32 %v536, %v553
        %v562 = vadd.f32 %v537, %v554
        %v563 = vadd.f32 %v538, %v555
        %v564 = vadd.f32 %v539, %v556
        %v565 = vadd.f32 %v540, %v557
        %v566 = vadd.f32 %v541, %v558
        %v567 = vadd.f32 %v542, %v559
        %v568 = vadd.f32 %v543, %v560
        %v569 = vld [vmem:[#allocation2 + $0x9] sm:$0xff]
        %v570 = vld [vmem:[#allocation2 + $0x21] sm:$0xff]
        %v571 = vld [vmem:[#allocation2 + $0x39] sm:$0xff]
        %v572 = vld [vmem:[#allocation2 + $0x51] sm:$0xff]
        %v573 = vld [vmem:[#allocation2 + $0x69] sm:$0xff]
        %v574 = vld [vmem:[#allocation2 + $0x81] sm:$0xff]
        %v575 = vld [vmem:[#allocation2 + $0x99] sm:$0xff]
        %v576 = vld [vmem:[#allocation2 + $0xb1] sm:$0xff]
        %v577 = vperm.slane %v512, 0
        %v578 = vmul.f32 %v569, %v577
        %v579 = vmul.f32 %v570, %v577
        %v580 = vmul.f32 %v571, %v577
        %v581 = vmul.f32 %v572, %v577
        %v582 = vmul.f32 %v573, %v577
        %v583 = vmul.f32 %v574, %v577
        %v584 = vmul.f32 %v575, %v577
        %v585 = vmul.f32 %v576, %v577
        %v586 = vadd.f32 %v561, %v578
        %v587 = vadd.f32 %v562, %v579
        %v588 = vadd.f32 %v563, %v580
        %v589 = vadd.f32 %v564, %v581
        %v590 = vadd.f32 %v565, %v582
        %v591 = vadd.f32 %v566, %v583
        %v592 = vadd.f32 %v567, %v584
        %v593 = vadd.f32 %v568, %v585
        %v594 = vld [vmem:[%s380 + $0x7] sm:$0xff]
        %v595 = vld [vmem:[%s380 + $0x1f] sm:$0xff]
        %v596 = vld [vmem:[%s380 + $0x37] sm:$0xff]
        %v597 = vld [vmem:[%s380 + $0x4f] sm:$0xff]
        %v598 = vld [vmem:[%s380 + $0x67] sm:$0xff]
        %v599 = vld [vmem:[%s380 + $0x7f] sm:$0xff]
        %v600 = vld [vmem:[%s380 + $0x97] sm:$0xff]
        %v601 = vld [vmem:[%s380 + $0xaf] sm:$0xff]
        %v602 = vperm.slane %v513, 0
        %v603 = vmul.f32 %v594, %v602
        %v604 = vmul.f32 %v595, %v602
        %v605 = vmul.f32 %v596, %v602
        %v606 = vmul.f32 %v597, %v602
        %v607 = vmul.f32 %v598, %v602
        %v608 = vmul.f32 %v599, %v602
        %v609 = vmul.f32 %v600, %v602
        %v610 = vmul.f32 %v601, %v602
        %v611 = vadd.f32 %v586, %v603
        %v612 = vadd.f32 %v587, %v604
        %v613 = vadd.f32 %v588, %v605
        %v614 = vadd.f32 %v589, %v606
        %v615 = vadd.f32 %v590, %v607
        %v616 = vadd.f32 %v591, %v608
        %v617 = vadd.f32 %v592, %v609
        %v618 = vadd.f32 %v593, %v610
        %v619 = vld [vmem:[%s380 + $0x8] sm:$0xff]
        %v620 = vld [vmem:[%s380 + $0x20] sm:$0xff]
        %v621 = vld [vmem:[%s380 + $0x38] sm:$0xff]
        %v622 = vld [vmem:[%s380 + $0x50] sm:$0xff]
        %v623 = vld [vmem:[%s380 + $0x68] sm:$0xff]
        %v624 = vld [vmem:[%s380 + $0x80] sm:$0xff]
        %v625 = vld [vmem:[%s380 + $0x98] sm:$0xff]
        %v626 = vld [vmem:[%s380 + $0xb0] sm:$0xff]
        %v627 = vperm.slane %v514, 0
        %v628 = vmul.f32 %v619, %v627
        %v629 = vmul.f32 %v620, %v627
        %v630 = vmul.f32 %v621, %v627
        %v631 = vmul.f32 %v622, %v627
        %v632 = vmul.f32 %v623, %v627
        %v633 = vmul.f32 %v624, %v627
        %v634 = vmul.f32 %v625, %v627
        %v635 = vmul.f32 %v626, %v627
        %v636 = vadd.f32 %v611, %v628
        %v637 = vadd.f32 %v612, %v629
        %v638 = vadd.f32 %v613, %v630
        %v639 = vadd.f32 %v614, %v631
        %v640 = vadd.f32 %v615, %v632
        %v641 = vadd.f32 %v616, %v633
        %v642 = vadd.f32 %v617, %v634
        %v643 = vadd.f32 %v618, %v635
        %v644 = vld [vmem:[%s380 + $0x9] sm:$0xff]
        %v645 = vld [vmem:[%s380 + $0x21] sm:$0xff]
        %v646 = vld [vmem:[%s380 + $0x39] sm:$0xff]
        %v647 = vld [vmem:[%s380 + $0x51] sm:$0xff]
        %v648 = vld [vmem:[%s380 + $0x69] sm:$0xff]
        %v649 = vld [vmem:[%s380 + $0x81] sm:$0xff]
        %v650 = vld [vmem:[%s380 + $0x99] sm:$0xff]
        %v651 = vld [vmem:[%s380 + $0xb1] sm:$0xff]
        %v652 = vperm.slane %v515, 0
        %v653 = vmul.f32 %v644, %v652
        %v654 = vmul.f32 %v645, %v652
        %v655 = vmul.f32 %v646, %v652
        %v656 = vmul.f32 %v647, %v652
        %v657 = vmul.f32 %v648, %v652
        %v658 = vmul.f32 %v649, %v652
        %v659 = vmul.f32 %v650, %v652
        %v660 = vmul.f32 %v651, %v652
        %v661 = vadd.f32 %v636, %v653
        %v662 = vadd.f32 %v637, %v654
        %v663 = vadd.f32 %v638, %v655
        %v664 = vadd.f32 %v639, %v656
        %v665 = vadd.f32 %v640, %v657
        %v666 = vadd.f32 %v641, %v658
        %v667 = vadd.f32 %v642, %v659
        %v668 = vadd.f32 %v643, %v660
        %s669 = scalar_lea.vmem [#allocation2], 48
        %v670 = vld [vmem:[%s669 + $0x7] sm:$0xff]
        %v671 = vld [vmem:[%s669 + $0x1f] sm:$0xff]
        %v672 = vld [vmem:[%s669 + $0x37] sm:$0xff]
        %v673 = vld [vmem:[%s669 + $0x4f] sm:$0xff]
        %v674 = vld [vmem:[%s669 + $0x67] sm:$0xff]
        %v675 = vld [vmem:[%s669 + $0x7f] sm:$0xff]
        %v676 = vld [vmem:[%s669 + $0x97] sm:$0xff]
        %v677 = vld [vmem:[%s669 + $0xaf] sm:$0xff]
        %v678 = vperm.slane %v516, 0
        %v679 = vmul.f32 %v670, %v678
        %v680 = vmul.f32 %v671, %v678
        %v681 = vmul.f32 %v672, %v678
        %v682 = vmul.f32 %v673, %v678
        %v683 = vmul.f32 %v674, %v678
        %v684 = vmul.f32 %v675, %v678
        %v685 = vmul.f32 %v676, %v678
        %v686 = vmul.f32 %v677, %v678
        %v687 = vadd.f32 %v661, %v679
        %v688 = vadd.f32 %v662, %v680
        %v689 = vadd.f32 %v663, %v681
        %v690 = vadd.f32 %v664, %v682
        %v691 = vadd.f32 %v665, %v683
        %v692 = vadd.f32 %v666, %v684
        %v693 = vadd.f32 %v667, %v685
        %v694 = vadd.f32 %v668, %v686
        %v695 = vld [vmem:[%s669 + $0x8] sm:$0xff]
        %v696 = vld [vmem:[%s669 + $0x20] sm:$0xff]
        %v697 = vld [vmem:[%s669 + $0x38] sm:$0xff]
        %v698 = vld [vmem:[%s669 + $0x50] sm:$0xff]
        %v699 = vld [vmem:[%s669 + $0x68] sm:$0xff]
        %v700 = vld [vmem:[%s669 + $0x80] sm:$0xff]
        %v701 = vld [vmem:[%s669 + $0x98] sm:$0xff]
        %v702 = vld [vmem:[%s669 + $0xb0] sm:$0xff]
        %v703 = vperm.slane %v517, 0
        %v704 = vmul.f32 %v695, %v703
        %v705 = vmul.f32 %v696, %v703
        %v706 = vmul.f32 %v697, %v703
        %v707 = vmul.f32 %v698, %v703
        %v708 = vmul.f32 %v699, %v703
        %v709 = vmul.f32 %v700, %v703
        %v710 = vmul.f32 %v701, %v703
        %v711 = vmul.f32 %v702, %v703
        %v712 = vadd.f32 %v687, %v704
        %v713 = vadd.f32 %v688, %v705
        %v714 = vadd.f32 %v689, %v706
        %v715 = vadd.f32 %v690, %v707
        %v716 = vadd.f32 %v691, %v708
        %v717 = vadd.f32 %v692, %v709
        %v718 = vadd.f32 %v693, %v710
        %v719 = vadd.f32 %v694, %v711
        %v720 = vld [vmem:[%s669 + $0x9] sm:$0xff]
        %v721 = vld [vmem:[%s669 + $0x21] sm:$0xff]
        %v722 = vld [vmem:[%s669 + $0x39] sm:$0xff]
        %v723 = vld [vmem:[%s669 + $0x51] sm:$0xff]
        %v724 = vld [vmem:[%s669 + $0x69] sm:$0xff]
        %v725 = vld [vmem:[%s669 + $0x81] sm:$0xff]
        %v726 = vld [vmem:[%s669 + $0x99] sm:$0xff]
        %v727 = vld [vmem:[%s669 + $0xb1] sm:$0xff]
        %v728 = vperm.slane %v518, 0
        %v729 = vmul.f32 %v720, %v728
        %v730 = vmul.f32 %v721, %v728
        %v731 = vmul.f32 %v722, %v728
        %v732 = vmul.f32 %v723, %v728
        %v733 = vmul.f32 %v724, %v728
        %v734 = vmul.f32 %v725, %v728
        %v735 = vmul.f32 %v726, %v728
        %v736 = vmul.f32 %v727, %v728
        %v737 = vadd.f32 %v712, %v729
        %v738 = vadd.f32 %v713, %v730
        %v739 = vadd.f32 %v714, %v731
        %v740 = vadd.f32 %v715, %v732
        %v741 = vadd.f32 %v716, %v733
        %v742 = vadd.f32 %v717, %v734
        %v743 = vadd.f32 %v718, %v735
        %v744 = vadd.f32 %v719, %v736
        %v746 = vperm.slane %v507, 0
        %v748 = vadd.f32 %v737, %v746
        %v749 = vadd.f32 %v738, %v746
        %v750 = vadd.f32 %v739, %v746
        %v751 = vadd.f32 %v740, %v746
        %v752 = vadd.f32 %v741, %v746
        %v753 = vadd.f32 %v742, %v746
        %v754 = vadd.f32 %v743, %v746
        %v755 = vadd.f32 %v744, %v746
        %vm756 = vcmp.gt.f32.partialorder %v748, 0.0
        %vm757 = vcmp.gt.f32.partialorder %v749, 0.0
        %vm758 = vcmp.gt.f32.partialorder %v750, 0.0
        %vm759 = vcmp.gt.f32.partialorder %v751, 0.0
        %vm760 = vcmp.gt.f32.partialorder %v752, 0.0
        %vm761 = vcmp.gt.f32.partialorder %v753, 0.0
        %vm762 = vcmp.gt.f32.partialorder %v754, 0.0
        %vm763 = vcmp.gt.f32.partialorder %v755, 0.0
        %v765 = vperm.slane %v508, 0
        %v767 = vmul.f32 %v765, %v748
        %v768 = vmul.f32 %v765, %v749
        %v769 = vmul.f32 %v765, %v750
        %v770 = vmul.f32 %v765, %v751
        %v771 = vmul.f32 %v765, %v752
        %v772 = vmul.f32 %v765, %v753
        %v773 = vmul.f32 %v765, %v754
        %v774 = vmul.f32 %v765, %v755
        %v775 = vsel %vm756, %v748, %v767
        %v776 = vsel %vm757, %v749, %v768
        %v777 = vsel %vm758, %v750, %v769
        %v778 = vsel %vm759, %v751, %v770
        %v779 = vsel %vm760, %v752, %v771
        %v780 = vsel %vm761, %v753, %v772
        %v781 = vsel %vm762, %v754, %v773
        %v782 = vsel %vm763, %v755, %v774
        %v783 = vld [vmem:[%s7] sm:$0xff]
        %v784 = vld [vmem:[%s7 + $0x8] sm:$0xff]
        %v785 = vld [vmem:[%s7 + $0x10] sm:$0xff]
        %v786 = vld [vmem:[%s7 + $0x18] sm:$0xff]
        %v787 = vld [vmem:[%s7 + $0x20] sm:$0xff]
        %v788 = vld [vmem:[%s7 + $0x28] sm:$0xff]
        %v789 = vld [vmem:[%s7 + $0x30] sm:$0xff]
        %v790 = vld [vmem:[%s7 + $0x38] sm:$0xff]
        %v791 = vld [vmem:[%s7 + $0x40] sm:$0xff]
        %v792 = vld [vmem:[%s7 + $0x48] sm:$0xff]
        %v793 = vld [vmem:[%s7 + $0x50] sm:$0xff]
        %v794 = vld [vmem:[%s7 + $0x58] sm:$0xff]
        %v795 = vld [vmem:[%s7 + $0x60] sm:$0xff]
        %v796 = vld [vmem:[%s7 + $0x68] sm:$0xff]
        %v797 = vld [vmem:[%s7 + $0x70] sm:$0xff]
        %v798 = vld [vmem:[%s7 + $0x78] sm:$0xff]
        %v800 = vperm.slane %v509, 0
        %802 = vmatpush.msra.mxu0 %v798
        %803 = vmatpush.msra.mxu0 %v797
        %804 = vmatpush.msra.mxu0 %v796
        %805 = vmatpush.msra.mxu0 %v795
        %806 = vmatpush.msra.mxu0 %v794
        %807 = vmatpush.msra.mxu0 %v793
        %808 = vmatpush.msra.mxu0 %v792
        %809 = vmatpush.msra.mxu0 %v791
        %810 = vmatpush.msra.mxu0 %v790
        %811 = vmatpush.msra.mxu0 %v789
        %812 = vmatpush.msra.mxu0 %v788
        %813 = vmatpush.msra.mxu0 %v787
        %814 = vmatpush.msra.mxu0 %v786
        %815 = vmatpush.msra.mxu0 %v785
        %816 = vmatpush.msra.mxu0 %v784
        %817 = vmatpush.msra.mxu0 %v783
        %818 = vmatmul.f32.gmra.mxu0 %v775
        %v819 = vpop.f32.mrf.mxu0
        %v820 = vadd.f32 %v800, %v819
        %821 = vmatmul.f32.gmra.mxu0 %v776
        %v822 = vpop.f32.mrf.mxu0
        %v823 = vadd.f32 %v800, %v822
        %824 = vmatmul.f32.gmra.mxu0 %v777
        %v825 = vpop.f32.mrf.mxu0
        %v826 = vadd.f32 %v800, %v825
        %827 = vmatmul.f32.gmra.mxu0 %v778
        %v828 = vpop.f32.mrf.mxu0
        %v829 = vadd.f32 %v800, %v828
        %830 = vmatmul.f32.gmra.mxu0 %v779
        %v831 = vpop.f32.mrf.mxu0
        %v832 = vadd.f32 %v800, %v831
        %833 = vmatmul.f32.gmra.mxu0 %v780
        %v834 = vpop.f32.mrf.mxu0
        %v835 = vadd.f32 %v800, %v834
        %836 = vmatmul.f32.gmra.mxu0 %v781
        %v837 = vpop.f32.mrf.mxu0
        %v838 = vadd.f32 %v800, %v837
        %839 = vmatmul.f32.gmra.mxu0 %v782
        %v840 = vpop.f32.mrf.mxu0
        %v841 = vadd.f32 %v800, %v840
        %842 = vdwg.mxu0
        %v843 = vadd.f32 %v820, %v365
        %v844 = vadd.f32 %v823, %v366
        %v845 = vadd.f32 %v826, %v367
        %v846 = vadd.f32 %v829, %v368
        %v847 = vadd.f32 %v832, %v369
        %v848 = vadd.f32 %v835, %v370
        %v849 = vadd.f32 %v838, %v371
        %v850 = vadd.f32 %v841, %v372
        %851 = vst.msk [vmem:[%s364] sm:$0xff] %vm406, %v843
        %852 = vst.msk [vmem:[%s364 + $0x8] sm:$0xff] %vm406, %v844
        %853 = vst.msk [vmem:[%s364 + $0x10] sm:$0xff] %vm406, %v845
        %854 = vst.msk [vmem:[%s364 + $0x18] sm:$0xff] %vm406, %v846
        %855 = vst.msk [vmem:[%s364 + $0x20] sm:$0xff] %vm406, %v847
        %856 = vst.msk [vmem:[%s364 + $0x28] sm:$0xff] %vm406, %v848
        %857 = vst.msk [vmem:[%s364 + $0x30] sm:$0xff] %vm406, %v849
        %858 = vst.msk [vmem:[%s364 + $0x38] sm:$0xff] %vm406, %v850
        %p859 = scmp.lt.s32.totalorder %s22, 1
        %s860 = scalar_select %p859, %s22, 1
        %s861 = smul.addr %s860, 8
        %s862 = smul.addr %s861, 8
        %s863 = scalar_lea.vmem %s9, %s862
        // Predicated region
        $region65: #{tpu_custom_call.1} parent=55 // pred_check
          %p864 = pneg %p234
        $region66: #{tpu_custom_call.1} parent=55 // pred_check_branch
          %866 = sbr.rel (%p864) target = $region68
        $region67: #{tpu_custom_call.1} parent=55 // pred_region
          _
        $region68: #{tpu_custom_call.1} parent=55 // pred_fallthru
          _
      $region56: #{tpu_custom_call.1} parent=5 // pred_fallthru
        _
      %p867 = scmp.le.s32.totalorder 2, %s17
      // Predicated region
      $region69: #{tpu_custom_call.1} parent=5 // pred_check
        %p868 = pneg %p867
      $region70: #{tpu_custom_call.1} parent=5 // pred_check_branch
        %870 = sbr.rel (%p868) target = $region72
      $region71: #{tpu_custom_call.1} parent=5 // pred_region
        %s871 = ssub.s32 %s17, 2
        // Predicated region
        $region73: #{tpu_custom_call.1} parent=71 // pred_check
          %p872 = pneg %p240
        $region74: #{tpu_custom_call.1} parent=71 // pred_check_branch
          %874 = sbr.rel (%p872) target = $region76
        $region75: #{tpu_custom_call.1} parent=71 // pred_region
          %p875 = scmp.lt.s32.totalorder %s23, 1
          %s876 = scalar_select %p875, %s23, 1
          %s877 = smul.addr %s876, 8
          %s878 = smul.addr %s877, 8
          %s879 = scalar_lea.vmem %s9, %s878
        $region76: #{tpu_custom_call.1} parent=71 // pred_fallthru
          _
      $region72: #{tpu_custom_call.1} parent=5 // pred_fallthru
        _
    $region6: #{tpu_custom_call.1} parent=1 // loop_footer
      %s21 = sadd.s32 1, %s17
    $region7: #{tpu_custom_call.1} parent=1 // loop_footer_branch
      %16 = sbr.rel target = $region3
    $region8: #{tpu_custom_call.1} parent=1 // loop_exit
      _
    %880 = vsyncpa [#allocation4], 1
    %s881 = scalar_lea.sflag [#allocation4], 1
    %882 = vsyncpa %s881, 1
    %883 = vsyncpa [#allocation6], 1

</llo_original>
